<compile_context>
chip_gen: v5e
topology: v5e:2x2
jax: 0.10.0
libtpu: 0.0.40
codegen_flags: <defaults>
</compile_context>

<pallas_src>
import functools
import math

import jax
import jax.numpy as jnp
from jax import lax
from jax.experimental import pallas as pl
from jax.experimental.pallas import tpu as pltpu

NEG_SLOPE = 0.01                 # F.leaky_relu default negative_slope
LANES = 128                      # kernel-side feature dims padded to a full vreg
NEG_INF = -1e30
VMEM_LIMIT = 48 * 1024 * 1024    # < v7x 64 MiB physical, ample on v5e/v6e


def _round_up(x, m):
    return ((x + m - 1) // m) * m


def _pad_rows(x, n):
    if x.shape[0] == n:
        return x
    return jnp.pad(x, ((0, n - x.shape[0]), (0, 0)))


# ---------------------------------------------------------------------------
# Prologue / generic row-tiled linear: y = x @ W + b (lane-padded output).
# Used per layer to precompute hx for ALL src nodes once (perf review item 1).
# ---------------------------------------------------------------------------
def _linear_kernel(x_ref, w_ref, b_ref, o_ref):
    o_ref[...] = (jnp.dot(x_ref[...], w_ref[...],
                          preferred_element_type=jnp.float32)
                  + b_ref[...]).astype(o_ref.dtype)


def linear_pallas(x, w_p, b_p, *, row_tile=1024):
    n, din = x.shape
    cp = w_p.shape[1]
    if n > row_tile:
        assert n % row_tile == 0
        trow = row_tile
    else:
        trow = n
    return pl.pallas_call(
        _linear_kernel,
        grid=(n // trow,),
        in_specs=[pl.BlockSpec((trow, din), lambda r: (r, 0)),
                  pl.BlockSpec((din, cp), lambda r: (0, 0)),
                  pl.BlockSpec((1, cp), lambda r: (0, 0))],
        out_specs=pl.BlockSpec((trow, cp), lambda r: (r, 0)),
        out_shape=jax.ShapeDtypeStruct((n, cp), jnp.float32),
        compiler_params=pltpu.CompilerParams(
            dimension_semantics=("parallel",),
            vmem_limit_bytes=VMEM_LIMIT),
    )(x, w_p, b_p)


# ---------------------------------------------------------------------------
# Fused attention + NodeUpdate kernel (per GAT block):
#   hx (precomputed): [:H]=h, col H = h.a_dst, col sum_col = 1
#   e[j,k]    = leaky_relu(self_h[j].a_dst + h[k].a_src), masked by adj
#   alpha     = softmax over in-edges (online over src tiles)
#   h_agg[j]  = sum_k alpha[j,k] * h[k]          (via p @ hx, denom in sum_col)
#   out[j]    = relu(self_h @ (Ws-Wa) + h_agg @ Wa + bg)   [NodeUpdate]
#   (last layer only) out[j] = out[j] @ Wfc + bfc          [fused final fc]
# ---------------------------------------------------------------------------
def _gat_attn_kernel(hx_src_ref, hx_dst_ref, adj_ref, asrc_ref,
                     wgs_ref, wga_ref, bg_ref, *rest,
                     hidden_dim, sum_col, fuse_fc):
    if fuse_fc:
        wfc_ref, bfc_ref, o_ref, dst_s_sc, m_sc, acc_sc = rest
    else:
        o_ref, dst_s_sc, m_sc, acc_sc = rest

    k = pl.program_id(1)
    H = hidden_dim

    @pl.when(k == 0)
    def _():
        # Hoist the dst attention score out of the inner loop (review item).
        dst_s_sc[...] = hx_dst_ref[:, H:H + 1]
        m_sc[...] = jnp.full_like(m_sc, NEG_INF)
        acc_sc[...] = jnp.zeros_like(acc_sc)

    hx = hx_src_ref[...]                                           # (Ts, Hp)

    # src attention score row: (1, Hp) x (Ts, Hp)^T -> (1, Ts)  (tiny MXU op)
    src_s = lax.dot_general(asrc_ref[...], hx, (((1,), (1,)), ((), ())),
                            preferred_element_type=jnp.float32)

    e = dst_s_sc[...] + src_s                                      # (Td, Ts)
    e = jnp.maximum(e, NEG_SLOPE * e)                              # leaky_relu
    e = jnp.where(adj_ref[...] > 0, e, jnp.float32(NEG_INF))       # mask non-edges

    # Online softmax accumulation over src tiles (flash pattern).
    m_prev = m_sc[...]
    m_new = jnp.maximum(m_prev, jnp.max(e, axis=-1, keepdims=True))
    scale = jnp.exp(m_prev - m_new)
    p = jnp.exp(e - m_new)               # masked entries underflow to exact 0
    # p @ hx also yields the softmax denominator in hx's constant-1 column.
    acc_sc[...] = scale * acc_sc[...] + jnp.dot(
        p, hx, preferred_element_type=jnp.float32)
    m_sc[...] = m_new

    @pl.when(k == pl.num_programs(1) - 1)
    def _():
        acc = acc_sc[...]
        l = acc[:, sum_col:sum_col + 1]                            # (Td, 1)
        h_agg = acc / l                                            # (Td, Hp)
        self_hx = hx_dst_ref[...]                                  # (Td, Hp)
        y = (jnp.dot(self_hx, wgs_ref[...], preferred_element_type=jnp.float32)
             + jnp.dot(h_agg, wga_ref[...], preferred_element_type=jnp.float32)
             + bg_ref[...])
        y = jnp.maximum(y, 0.0)                                    # NodeUpdate relu
        if fuse_fc:
            y = (jnp.dot(y, wfc_ref[...], preferred_element_type=jnp.float32)
                 + bfc_ref[...])
        o_ref[...] = y.astype(o_ref.dtype)


def gat_attention_layer(hx, hx_dst, adj, asrc_p, wgs_p, wga_p, bg_p, *,
                        wfc_p=None, bfc_p=None, hidden_dim, sum_col,
                        dst_tile=512, src_tile=1024):
    assert dst_tile % 32 == 0 and src_tile % 128 == 0
    ns_p, hp = hx.shape
    nd = hx_dst.shape[0]
    fuse_fc = wfc_p is not None
    cp = wfc_p.shape[1] if fuse_fc else hp

    # src tiling: ns_p is already a multiple of 128 (and of src_tile if tiled).
    tsrc = src_tile if ns_p > src_tile else ns_p
    assert ns_p % tsrc == 0

    # dst tiling: multiples of 32 (native int8 sublane packing); for layers that
    # fit one tile, still split into 2 tiles so the "parallel" axis feeds both
    # TensorCores on v7x (negligible extra cost on single-TC v5e/v6e).
    if nd > dst_tile:
        tdst = dst_tile
    elif nd > 32:
        tdst = _round_up(pl.cdiv(nd, 2), 32)
    else:
        tdst = _round_up(nd, 8)
    nd_p = _round_up(nd, tdst)

    hx_dst = _pad_rows(hx_dst, nd_p)
    adj = jnp.pad(adj, ((0, nd_p - adj.shape[0]), (0, ns_p - adj.shape[1])))

    grid = (nd_p // tdst, ns_p // tsrc)   # dst tiles parallel, src reduction last

    in_specs = [
        pl.BlockSpec((tsrc, hp), lambda i, k: (k, 0)),     # hx (src stream)
        pl.BlockSpec((tdst, hp), lambda i, k: (i, 0)),     # hx[nid] (dst tile)
        pl.BlockSpec((tdst, tsrc), lambda i, k: (i, k)),   # adj tile (int8)
        pl.BlockSpec((1, hp), lambda i, k: (0, 0)),        # a_src (padded)
        pl.BlockSpec((hp, hp), lambda i, k: (0, 0)),       # NodeUpdate Ws - Wa
        pl.BlockSpec((hp, hp), lambda i, k: (0, 0)),       # NodeUpdate Wa
        pl.BlockSpec((1, hp), lambda i, k: (0, 0)),        # NodeUpdate bias
    ]
    args = [hx, hx_dst, adj, asrc_p, wgs_p, wga_p, bg_p]
    if fuse_fc:
        in_specs += [pl.BlockSpec((hp, cp), lambda i, k: (0, 0)),   # final fc W
                     pl.BlockSpec((1, cp), lambda i, k: (0, 0))]    # final fc b
        args += [wfc_p, bfc_p]

    out = pl.pallas_call(
        functools.partial(_gat_attn_kernel, hidden_dim=hidden_dim,
                          sum_col=sum_col, fuse_fc=fuse_fc),
        grid=grid,
        in_specs=in_specs,
        out_specs=pl.BlockSpec((tdst, cp), lambda i, k: (i, 0)),
        out_shape=jax.ShapeDtypeStruct((nd_p, cp), jnp.float32),
        scratch_shapes=[
            pltpu.VMEM((tdst, 1), jnp.float32),    # hoisted dst attention score
            pltpu.VMEM((tdst, 1), jnp.float32),    # m (running max)
            pltpu.VMEM((tdst, hp), jnp.float32),   # acc (+ denominator column)
        ],
        compiler_params=pltpu.CompilerParams(
            dimension_semantics=("parallel", "arbitrary"),
            vmem_limit_bytes=VMEM_LIMIT),
    )(*args)
    return out[:nd]


# ---------------------------------------------------------------------------
# Parameter init (deterministic, mimics torch.nn.Linear default init)
# ---------------------------------------------------------------------------
def _torch_linear_init(key, fan_in, fan_out, bias=True):
    kw, kb = jax.random.split(key)
    bound = 1.0 / math.sqrt(fan_in)
    w = jax.random.uniform(kw, (fan_in, fan_out), jnp.float32, -bound, bound)
    if bias:
        b = jax.random.uniform(kb, (fan_out,), jnp.float32, -bound, bound)
        return w, b
    return w, None


def init_gat_params(key, in_dim, hidden_dim, num_class, num_layers):
    keys = jax.random.split(key, 3 * num_layers + 1)
    feat, attn, gcn = [], [], []
    for i in range(num_layers):
        f_in = in_dim if i == 0 else hidden_dim
        wf, bf = _torch_linear_init(keys[3 * i], f_in, hidden_dim)
        wa, _ = _torch_linear_init(keys[3 * i + 1], 2 * hidden_dim, 1, bias=False)
        a_src = wa[:hidden_dim, :].T          # (1, H): applied to edge-src h
        a_dst = wa[hidden_dim:, :].T          # (1, H): applied to dst self_h
        wg, bg = _torch_linear_init(keys[3 * i + 2], 2 * hidden_dim, hidden_dim)
        feat.append((wf, bf))
        attn.append((a_src, a_dst))
        gcn.append((wg[:hidden_dim, :], wg[hidden_dim:, :], bg))
    wfc, bfc = _torch_linear_init(keys[-1], hidden_dim, num_class)
    return {"feat": feat, "attn": attn, "gcn": gcn, "fc": (wfc, bfc)}


# ---------------------------------------------------------------------------
# Fold / zero-pad weights for the fused kernels (exact: padding contributes 0).
# ---------------------------------------------------------------------------
def prepare_params(params, hp=LANES, cp=LANES):
    H = params["feat"][0][0].shape[1]
    assert hp >= H + 2
    sum_col = H + 1                       # constant-1 denominator column in hx
    layers = []
    for i in range(len(params["feat"])):
        wf, bf = params["feat"][i]
        a_src, a_dst = params["attn"][i]
        wg_self, wg_agg, bg = params["gcn"][i]
        din, h = wf.shape
        din_eff = din if i == 0 else hp   # layers >=1 consume the padded output

        wext = jnp.zeros((din_eff, hp), jnp.float32)
        wext = wext.at[:din, :h].set(wf)
        wext = wext.at[:din, h].set((wf @ a_dst.T)[:, 0])   # folded dst attn col
        bext = jnp.zeros((1, hp), jnp.float32)
        bext = bext.at[0, :h].set(bf)
        bext = bext.at[0, h].set(jnp.dot(bf, a_dst[0]))
        bext = bext.at[0, sum_col].set(1.0)                 # MXU row-sum column

        asrc_p = jnp.zeros((1, hp), jnp.float32).at[0, :h].set(a_src[0])

        wgs_p = jnp.zeros((hp, hp), jnp.float32).at[:h, :h].set(wg_self - wg_agg)
        wga_p = jnp.zeros((hp, hp), jnp.float32).at[:h, :h].set(wg_agg)
        bg_p = jnp.zeros((1, hp), jnp.float32).at[0, :h].set(bg)

        layers.append((wext, bext, asrc_p, wgs_p, wga_p, bg_p))

    wfc, bfc = params["fc"]
    h, c = wfc.shape
    wfc_p = jnp.zeros((hp, cp), jnp.float32).at[:h, :c].set(wfc)
    bfc_p = jnp.zeros((1, cp), jnp.float32).at[0, :c].set(bfc)
    return layers, (wfc_p, bfc_p), sum_col


# ---------------------------------------------------------------------------
# Full GATInfer forward over a NodeFlow (adjs: dense int8 masks per block,
# layer_nids: parent-nid remap of dst nodes into the previous layer).
# dropout=None in the reference module -> identity feat path.
# ---------------------------------------------------------------------------
def gat_infer(params, node_features, adjs, layer_nids, *,
              dst_tile=512, src_tile=1024):
    hidden_dim = params["feat"][0][0].shape[1]
    num_class = params["fc"][0].shape[1]
    layer_params, (wfc_p, bfc_p), sum_col = prepare_params(params)
    num_layers = len(layer_params)

    act = node_features
    for i, (wext, bext, asrc_p, wgs_p, wga_p, bg_p) in enumerate(layer_params):
        ns = act.shape[0]
        ns_p = _round_up(ns, src_tile) if ns > src_tile else _round_up(ns, 128)
        act_p = _pad_rows(act, ns_p)
        # Prologue: hx computed once for every src node of this block.
        hx = linear_pallas(act_p, wext, bext, row_tile=src_tile)
        # NodeFlow parent-nid remap of dst nodes (self_h gather, done on hx).
        hx_dst = jnp.take(hx, layer_nids[i], axis=0)
        last = i == num_layers - 1
        act = gat_attention_layer(
            hx, hx_dst, adjs[i], asrc_p, wgs_p, wga_p, bg_p,
            wfc_p=wfc_p if last else None,
            bfc_p=bfc_p if last else None,
            hidden_dim=hidden_dim, sum_col=sum_col,
            dst_tile=dst_tile, src_tile=src_tile)
    return act[:, :num_class]


def gat_infer_ref(params, node_features, adjs, layer_nids):
    """Pure-JAX reference matching the PyTorch semantics."""
    act = node_features
    for i in range(len(params["feat"])):
        wf, bf = params["feat"][i]
        a_src, a_dst = params["attn"][i]
        wg_self, wg_agg, bg = params["gcn"][i]
        h = act @ wf + bf
        self_h = h[layer_nids[i]]
        e = (self_h @ a_dst.T) + (h @ a_src.T).T          # (Nd, Ns)
        e = jnp.where(e >= 0.0, e, NEG_SLOPE * e)
        mask = adjs[i] > 0
        e = jnp.where(mask, e, NEG_INF)
        p = jnp.exp(e - jnp.max(e, axis=-1, keepdims=True)) * mask
        alpha = p / jnp.sum(p, axis=-1, keepdims=True)
        h_agg = alpha @ h
        act = jax.nn.relu(self_h @ wg_self + (h_agg - self_h) @ wg_agg + bg)
    wfc, bfc = params["fc"]
    return act @ wfc + bfc


if __name__ == "__main__":
    in_dim, hidden_dim, num_class, num_layers = 16, 32, 8, 2
    # NodeFlow layer node counts (layer 0 .. num_layers); chosen so the small
    # demo exercises multi-tile dst ("parallel"), multi-tile src (online
    # softmax reduction), row/col padding and the fused final fc.
    layer_sizes = [200, 48, 16]

    key = jax.random.PRNGKey(0)
    kparam, kfeat, *kg = jax.random.split(key, 2 + 2 * num_layers)

    params = init_gat_params(kparam, in_dim, hidden_dim, num_class, num_layers)
    node_features = jax.random.normal(kfeat, (layer_sizes[0], in_dim), jnp.float32)

    adjs, layer_nids = [], []
    for i in range(num_layers):
        ns, nd = layer_sizes[i], layer_sizes[i + 1]
        nid = jax.random.permutation(kg[2 * i], ns)[:nd].astype(jnp.int32)
        adj = (jax.random.uniform(kg[2 * i + 1], (nd, ns)) < 0.3).astype(jnp.int8)
        adj = adj.at[jnp.arange(nd), nid].set(1)          # guarantee >=1 in-edge
        adjs.append(adj)
        layer_nids.append(nid)

    # Small tiles here to exercise the tiled grid + online softmax at demo size
    # (production defaults are dst_tile=512, src_tile=1024).
    out = gat_infer(params, node_features, adjs, layer_nids,
                    dst_tile=32, src_tile=128)
    jax.block_until_ready(out)

    ref = gat_infer_ref(params, node_features, adjs, layer_nids)
    assert out.shape == (layer_sizes[-1], num_class)
    max_err = float(jnp.max(jnp.abs(out - ref)))
    assert jnp.allclose(out, ref, rtol=2e-3, atol=2e-3), max_err

    print("KERNEL_OK")
</pallas_src>

<mosaic_0001>
module attributes {stable_mosaic.version = 11 : i64} {
  func.func @_linear_kernel(%arg0: i32, %arg1: memref<128x16xf32, #tpu.memory_space<vmem>>, %arg2: memref<16x128xf32, #tpu.memory_space<vmem>>, %arg3: memref<1x128xf32, #tpu.memory_space<vmem>>, %arg4: memref<128x128xf32, #tpu.memory_space<vmem>>) attributes {dimension_semantics = [#tpu.dimension_semantics<parallel>], iteration_bounds = array<i64: 2>, scalar_prefetch = 0 : i64, scratch_operands = 0 : i64, tpu.core_type = #tpu.core_type<tc>, window_params = [{transform_indices = @transform_0, window_bounds = array<i64: 128, 16>}, {pipeline_mode = #tpu.pipeline_mode<synchronous>, transform_indices = @transform_1, window_bounds = array<i64: 16, 128>}, {pipeline_mode = #tpu.pipeline_mode<synchronous>, transform_indices = @transform_2, window_bounds = array<i64: 1, 128>}, {transform_indices = @transform_3, window_bounds = array<i64: 128, 128>}]} {
    %c0 = arith.constant 0 : index
    %c0_0 = arith.constant 0 : index
    %0 = vector.load %arg1[%c0, %c0_0] : memref<128x16xf32, #tpu.memory_space<vmem>>, vector<128x16xf32>
    %c0_1 = arith.constant 0 : index
    %c0_2 = arith.constant 0 : index
    %1 = vector.load %arg2[%c0_1, %c0_2] : memref<16x128xf32, #tpu.memory_space<vmem>>, vector<16x128xf32>
    %cst = arith.constant dense<0.000000e+00> : vector<128x128xf32>
    %2 = tpu.matmul %0, %1, %cst {dimension_numbers = #tpu.dot_dimension_numbers<[1], [0], [0], [1], [0, 0, 1, 1], [], []>} : vector<128x16xf32>, vector<16x128xf32>, vector<128x128xf32> -> vector<128x128xf32>
    %c0_3 = arith.constant 0 : index
    %c0_4 = arith.constant 0 : index
    %3 = vector.load %arg3[%c0_3, %c0_4] : memref<1x128xf32, #tpu.memory_space<vmem>>, vector<1x128xf32>
    %4 = vector.broadcast %3 : vector<1x128xf32> to vector<128x128xf32>
    %5 = arith.addf %2, %4 : vector<128x128xf32>
    %c0_5 = arith.constant 0 : index
    %c0_6 = arith.constant 0 : index
    %6 = vector.load %arg4[%c0_5, %c0_6] : memref<128x128xf32, #tpu.memory_space<vmem>>, vector<128x128xf32>
    tpu.vector_store %arg4[%c0_5, %c0_6], %5 {strides = array<i32>} : memref<128x128xf32, #tpu.memory_space<vmem>>, vector<128x128xf32>,
    return
  }
  func.func @transform_0(%arg0: i32) -> (i32, i32) {
    %c0_i32 = arith.constant 0 : i32
    %c0_i32_0 = arith.constant 0 : i32
    return %arg0, %c0_i32 : i32, i32
  }
  func.func @transform_1(%arg0: i32) -> (i32, i32) {
    %c0_i32 = arith.constant 0 : i32
    %c0_i32_0 = arith.constant 0 : i32
    %c0_i32_1 = arith.constant 0 : i32
    return %c0_i32, %c0_i32_0 : i32, i32
  }
  func.func @transform_2(%arg0: i32) -> (i32, i32) {
    %c0_i32 = arith.constant 0 : i32
    %c0_i32_0 = arith.constant 0 : i32
    %c0_i32_1 = arith.constant 0 : i32
    return %c0_i32, %c0_i32_0 : i32, i32
  }
  func.func @transform_3(%arg0: i32) -> (i32, i32) {
    %c0_i32 = arith.constant 0 : i32
    %c0_i32_0 = arith.constant 0 : i32
    return %arg0, %c0_i32 : i32, i32
  }
}

</mosaic_0001>

<llo_original>
// kernel: tpu_custom_call.1
$region0: #{tpu_custom_call.1}
  #allocation0 [shape = 'u32[]', space=smem, size = 0x4, offset = 0x4, fixed_abs, tag = 'smem constant byte address 0x4 - core index']
  #allocation1 [shape = 'u32[72,128]{1,0:T(1,128)}', space=vmem, size = 0x9000, scoped, tag = 'internal scratch']
  %s0 = inlined_call_operand.vmem [shape: f32[256,16], index: 0, kind: input, shape index: {}]
  %s1 = inlined_call_operand.vmem [shape: f32[16,128], index: 1, kind: input, shape index: {}]
  %s2 = inlined_call_operand.vmem [shape: f32[1,128], index: 2, kind: input, shape index: {}]
  %s3 = inlined_call_operand.hbm [shape: f32[256,128], index: 3, kind: output, shape index: {}]
  %s4 = sld [smem:[#allocation0]]
  $region45: #{tpu_custom_call.1} parent=0
    _
  %s6 = ssub.s32 1, %s4
  %s7 = scalar_select 0, %s6, %s4
  $region1: #{tpu_custom_call.1} parent=0
    #allocation2 [shape = 'u8[131072]{0}', space=vmem, size = 0x20000, scoped, tag = 'output window, operand 0']
    #allocation3 [shape = 's32[2]{0}', space=sflag, size = 0x8, scoped, tag = 'scoped memory for tpu_custom_call.1']
    %8 = vsyncpa [#allocation3], 0
    %s9 = scalar_lea.sflag [#allocation3], 1
    %10 = vsyncpa %s9, 0
    loop: start=0, step=1, limit=4
    $region2: #{tpu_custom_call.1} parent=1 // loop_pre_header
      _
    $region3: #{tpu_custom_call.1} parent=1 // loop_header
      %s12 = sphi 0, %s16
      %p13 = scmp.ge.s32.totalorder %s12, 4
      %s22 = sphi 0, %s24
      %s25 = sphi 0, %s22
      %s26 = sphi 0, %s25
      %s42 = sphi 0, %s26
      %s46 = sphi 0, %s46
      %s48 = sphi 0, %s46
      %s49 = sphi 0, %s48
      %s63 = sphi 0, %s49
      %s67 = sphi 0, %s67
      %s69 = sphi 0, %s67
      %s70 = sphi 0, %s69
      %s84 = sphi 0, %s70
      %s90 = sphi 0, %s92
      %s93 = sphi 0, %s90
      %s94 = sphi 0, %s93
      %s110 = sphi 0, %s94
    $region4: #{tpu_custom_call.1} parent=1 // loop_header_branch
      %15 = sbr.rel (%p13) target = $region8
    $region5: #{tpu_custom_call.1} parent=1 // loop_body
      %s17 = ssub.s32 %s12, 1
      %s18 = ssub.s32 %s12, 2
      %s19 = sadd.s32 %s12, 1
      %s20 = ssub.s32 %s12, %s19
      %p21 = scmp.eq.s32.totalorder %s20, 0
      %s23 = sadd.s32 %s22, 1
      %s24 = scalar_select %p21, %s22, %s23
      %p27 = pneg %p21
      %p28 = scmp.eq.s32.totalorder %s12, 1
      %p29 = por %p27, %p28
      %p30 = scmp.ne.s32.totalorder %s22, %s25
      %p31 = scmp.eq.s32.totalorder %s12, 0
      %p32 = por %p30, %p31
      %p33 = scmp.ne.s32.totalorder %s22, %s25
      %p34 = scmp.eq.s32.totalorder %s17, 1
      %p35 = por %p33, %p34
      %p36 = scmp.ne.s32.totalorder %s25, %s26
      %p37 = scmp.eq.s32.totalorder %s17, 0
      %p38 = por %p36, %p37
      %p39 = scmp.ne.s32.totalorder %s25, %s26
      %p40 = scmp.eq.s32.totalorder %s18, 1
      %p41 = por %p39, %p40
      %p43 = scmp.ne.s32.totalorder %s26, %s42
      %p44 = scmp.eq.s32.totalorder %s18, 0
      %p45 = por %p43, %p44
      %s47 = sadd.s32 %s46, 1
      %p50 = scmp.eq.s32.totalorder %s12, 1
      %p51 = scmp.ne.s32.totalorder %s46, %s48
      %p52 = scmp.eq.s32.totalorder %s12, 0
      %p53 = por %p51, %p52
      %p54 = scmp.ne.s32.totalorder %s46, %s48
      %p55 = scmp.eq.s32.totalorder %s17, 1
      %p56 = por %p54, %p55
      %p57 = scmp.ne.s32.totalorder %s48, %s49
      %p58 = scmp.eq.s32.totalorder %s17, 0
      %p59 = por %p57, %p58
      %p60 = scmp.ne.s32.totalorder %s48, %s49
      %p61 = scmp.eq.s32.totalorder %s18, 1
      %p62 = por %p60, %p61
      %p64 = scmp.ne.s32.totalorder %s49, %s63
      %p65 = scmp.eq.s32.totalorder %s18, 0
      %p66 = por %p64, %p65
      %s68 = sadd.s32 %s67, 1
      %p71 = scmp.eq.s32.totalorder %s12, 1
      %p72 = scmp.ne.s32.totalorder %s67, %s69
      %p73 = scmp.eq.s32.totalorder %s12, 0
      %p74 = por %p72, %p73
      %p75 = scmp.ne.s32.totalorder %s67, %s69
      %p76 = scmp.eq.s32.totalorder %s17, 1
      %p77 = por %p75, %p76
      %p78 = scmp.ne.s32.totalorder %s69, %s70
      %p79 = scmp.eq.s32.totalorder %s17, 0
      %p80 = por %p78, %p79
      %p81 = scmp.ne.s32.totalorder %s69, %s70
      %p82 = scmp.eq.s32.totalorder %s18, 1
      %p83 = por %p81, %p82
      %p85 = scmp.ne.s32.totalorder %s70, %s84
      %p86 = scmp.eq.s32.totalorder %s18, 0
      %p87 = por %p85, %p86
      %s88 = ssub.s32 %s12, %s19
      %p89 = scmp.eq.s32.totalorder %s88, 0
      %s91 = sadd.s32 %s90, 1
      %s92 = scalar_select %p89, %s90, %s91
      %p95 = pneg %p89
      %p96 = scmp.eq.s32.totalorder %s12, 1
      %p97 = por %p95, %p96
      %p98 = scmp.ne.s32.totalorder %s90, %s93
      %p99 = scmp.eq.s32.totalorder %s12, 0
      %p100 = por %p98, %p99
      %p101 = scmp.ne.s32.totalorder %s90, %s93
      %p102 = scmp.eq.s32.totalorder %s17, 1
      %p103 = por %p101, %p102
      %p104 = scmp.ne.s32.totalorder %s93, %s94
      %p105 = scmp.eq.s32.totalorder %s17, 0
      %p106 = por %p104, %p105
      %p107 = scmp.ne.s32.totalorder %s93, %s94
      %p108 = scmp.eq.s32.totalorder %s18, 1
      %p109 = por %p107, %p108
      %p111 = scmp.ne.s32.totalorder %s94, %s110
      %p112 = scmp.eq.s32.totalorder %s18, 0
      %p113 = por %p111, %p112
      %p114 = scmp.le.s32.totalorder 1, %s12
      %p115 = scmp.lt.s32.totalorder %s12, 3
      %p116 = pnand %p114, %p115
      %p117 = pneg %p116
      // Predicated region
      $region9: #{tpu_custom_call.1} parent=5 // pred_check
        _
      $region10: #{tpu_custom_call.1} parent=5 // pred_check_branch
        %119 = sbr.rel (%p116) target = $region12
      $region11: #{tpu_custom_call.1} parent=5 // pred_region
        %s120 = ssub.s32 %s12, 1
        // Predicated region
        $region13: #{tpu_custom_call.1} parent=11 // pred_check
          %p121 = pneg %p59
        $region14: #{tpu_custom_call.1} parent=11 // pred_check_branch
          %123 = sbr.rel (%p121) target = $region16
        $region15: #{tpu_custom_call.1} parent=11 // pred_region
          _
        $region16: #{tpu_custom_call.1} parent=11 // pred_fallthru
          _
        // Predicated region
        $region17: #{tpu_custom_call.1} parent=11 // pred_check
          %p124 = pneg %p80
        $region18: #{tpu_custom_call.1} parent=11 // pred_check_branch
          %126 = sbr.rel (%p124) target = $region20
        $region19: #{tpu_custom_call.1} parent=11 // pred_region
          _
        $region20: #{tpu_custom_call.1} parent=11 // pred_fallthru
          _
      $region12: #{tpu_custom_call.1} parent=5 // pred_fallthru
        _
      %p127 = scmp.lt.s32.totalorder %s12, 2
      // Predicated region
      $region21: #{tpu_custom_call.1} parent=5 // pred_check
        %p128 = pneg %p127
      $region22: #{tpu_custom_call.1} parent=5 // pred_check_branch
        %130 = sbr.rel (%p128) target = $region24
      $region23: #{tpu_custom_call.1} parent=5 // pred_region
        // Predicated region
        $region25: #{tpu_custom_call.1} parent=23 // pred_check
          %p131 = pneg %p32
        $region26: #{tpu_custom_call.1} parent=23 // pred_check_branch
          %133 = sbr.rel (%p131) target = $region28
        $region27: #{tpu_custom_call.1} parent=23 // pred_region
          %s134 = smul.u32 16, %s12
          %p135 = scmp.lt.s32.totalorder %s134, 31
          %s136 = scalar_select %p135, %s134, 31
          %s137 = smul.addr %s136, 8
          %s138 = scalar_lea.vmem %s0, %s137
          %s139 = smul.u32 16, %s12
        $region28: #{tpu_custom_call.1} parent=23 // pred_fallthru
          _
      $region24: #{tpu_custom_call.1} parent=5 // pred_fallthru
        _
      %p140 = scmp.le.s32.totalorder 1, %s12
      %p141 = scmp.lt.s32.totalorder %s12, 3
      %p142 = pnand %p140, %p141
      %p143 = pneg %p142
      // Predicated region
      $region29: #{tpu_custom_call.1} parent=5 // pred_check
        _
      $region30: #{tpu_custom_call.1} parent=5 // pred_check_branch
        %145 = sbr.rel (%p142) target = $region32
      $region31: #{tpu_custom_call.1} parent=5 // pred_region
        %s146 = ssub.s32 %s12, 1
        %s147 = smul.u32 16, %s17
        %p148 = scmp.lt.s32.totalorder %s147, 31
        %s149 = scalar_select %p148, %s147, 31
        %s150 = smul.addr %s149, 8
        %s151 = scalar_lea.vmem %s0, %s150
        %p152 = pneg %p38
        %p153 = pneg %p35
        %p154 = pneg %p59
        %p155 = pneg %p56
        %p156 = pneg %p80
        %p157 = pneg %p77
        %p158 = pneg %p106
        %p159 = pneg %p103
        %s160 = sand.u32 %s93, 1
        %s161 = scalar_lea.sflag [#allocation3], %s160
        %s162 = sand.u32 %s93, 1
        %s163 = smul.addr %s162, 128
        %s164 = scalar_lea.vmem [#allocation2], %s163
        %s165 = smul.u32 16, %s17
        %p166 = scmp.lt.s32.totalorder %s165, 31
        %s167 = scalar_select %p166, %s165, 31
        %s168 = smul.addr %s167, 8
        %s169 = scalar_lea.vmem %s0, %s168
        %s170 = smul.u32 16, %s17
        %s171 = smul.u32 16, %s17
        %v172 = vld [vmem:[%s169] sm:$0xff]
        %v173 = vld [vmem:[%s169 + $0x8] sm:$0xff]
        %v174 = vld [vmem:[%s169 + $0x10] sm:$0xff]
        %v175 = vld [vmem:[%s169 + $0x18] sm:$0xff]
        %v176 = vld [vmem:[%s169 + $0x20] sm:$0xff]
        %v177 = vld [vmem:[%s169 + $0x28] sm:$0xff]
        %v178 = vld [vmem:[%s169 + $0x30] sm:$0xff]
        %v179 = vld [vmem:[%s169 + $0x38] sm:$0xff]
        %v180 = vld [vmem:[%s169 + $0x40] sm:$0xff]
        %v181 = vld [vmem:[%s169 + $0x48] sm:$0xff]
        %v182 = vld [vmem:[%s169 + $0x50] sm:$0xff]
        %v183 = vld [vmem:[%s169 + $0x58] sm:$0xff]
        %v184 = vld [vmem:[%s169 + $0x60] sm:$0xff]
        %v185 = vld [vmem:[%s169 + $0x68] sm:$0xff]
        %v186 = vld [vmem:[%s169 + $0x70] sm:$0xff]
        %v187 = vld [vmem:[%s169 + $0x78] sm:$0xff]
        %v188 = vld [vmem:[%s1] sm:$0xff]
        %v189 = vld [vmem:[%s1 + $0x8] sm:$0xff]
        %v190 = vld [vmem:[%s2] sm:$0x1]
        %v192 = vperm.slane %v190, 0
        %vm194 = vcmask 130048
        %v196 = vsel %vm194, %v172, 0
        %v199 = vsel %vm194, %v173, 0
        %v202 = vsel %vm194, %v174, 0
        %v205 = vsel %vm194, %v175, 0
        %v208 = vsel %vm194, %v176, 0
        %v211 = vsel %vm194, %v177, 0
        %v214 = vsel %vm194, %v178, 0
        %v217 = vsel %vm194, %v179, 0
        %v220 = vsel %vm194, %v180, 0
        %v223 = vsel %vm194, %v181, 0
        %v226 = vsel %vm194, %v182, 0
        %v229 = vsel %vm194, %v183, 0
        %v232 = vsel %vm194, %v184, 0
        %v235 = vsel %vm194, %v185, 0
        %v238 = vsel %vm194, %v186, 0
        %v241 = vsel %vm194, %v187, 0
        %243 = vmatpush.msra.mxu0 0.0
        %244 = vmatpush.msra.mxu0 0.0
        %245 = vmatpush.msra.mxu0 0.0
        %246 = vmatpush.msra.mxu0 0.0
        %247 = vmatpush.msra.mxu0 0.0
        %248 = vmatpush.msra.mxu0 0.0
        %249 = vmatpush.msra.mxu0 0.0
        %250 = vmatpush.msra.mxu0 0.0
        %251 = vmatpush.msra.mxu0 0.0
        %252 = vmatpush.msra.mxu0 0.0
        %253 = vmatpush.msra.mxu0 0.0
        %254 = vmatpush.msra.mxu0 0.0
        %255 = vmatpush.msra.mxu0 0.0
        %256 = vmatpush.msra.mxu0 0.0
        %257 = vmatpush.msra.mxu0 %v189
        %258 = vmatpush.msra.mxu0 %v188
        %259 = vmatmul.f32.gmra.mxu0 %v196
        %v260 = vpop.f32.mrf.mxu0
        %v261 = vadd.f32 %v192, %v260
        %262 = vmatmul.f32.gmra.mxu0 %v199
        %v263 = vpop.f32.mrf.mxu0
        %v264 = vadd.f32 %v192, %v263
        %265 = vmatmul.f32.gmra.mxu0 %v202
        %v266 = vpop.f32.mrf.mxu0
        %v267 = vadd.f32 %v192, %v266
        %268 = vmatmul.f32.gmra.mxu0 %v205
        %v269 = vpop.f32.mrf.mxu0
        %v270 = vadd.f32 %v192, %v269
        %271 = vmatmul.f32.gmra.mxu0 %v208
        %v272 = vpop.f32.mrf.mxu0
        %v273 = vadd.f32 %v192, %v272
        %274 = vmatmul.f32.gmra.mxu0 %v211
        %v275 = vpop.f32.mrf.mxu0
        %v276 = vadd.f32 %v192, %v275
        %277 = vmatmul.f32.gmra.mxu0 %v214
        %v278 = vpop.f32.mrf.mxu0
        %v279 = vadd.f32 %v192, %v278
        %280 = vmatmul.f32.gmra.mxu0 %v217
        %v281 = vpop.f32.mrf.mxu0
        %v282 = vadd.f32 %v192, %v281
        %283 = vmatmul.f32.gmra.mxu0 %v220
        %v284 = vpop.f32.mrf.mxu0
        %v285 = vadd.f32 %v192, %v284
        %286 = vmatmul.f32.gmra.mxu0 %v223
        %v287 = vpop.f32.mrf.mxu0
        %v288 = vadd.f32 %v192, %v287
        %289 = vmatmul.f32.gmra.mxu0 %v226
        %v290 = vpop.f32.mrf.mxu0
        %v291 = vadd.f32 %v192, %v290
        %292 = vmatmul.f32.gmra.mxu0 %v229
        %v293 = vpop.f32.mrf.mxu0
        %v294 = vadd.f32 %v192, %v293
        %295 = vmatmul.f32.gmra.mxu0 %v232
        %v296 = vpop.f32.mrf.mxu0
        %v297 = vadd.f32 %v192, %v296
        %298 = vmatmul.f32.gmra.mxu0 %v235
        %v299 = vpop.f32.mrf.mxu0
        %v300 = vadd.f32 %v192, %v299
        %301 = vmatmul.f32.gmra.mxu0 %v238
        %v302 = vpop.f32.mrf.mxu0
        %v303 = vadd.f32 %v192, %v302
        %304 = vmatmul.f32.gmra.mxu0 %v241
        %v305 = vpop.f32.mrf.mxu0
        %v306 = vadd.f32 %v192, %v305
        %307 = vdwg.mxu0
        %308 = vst [vmem:[%s164] sm:$0xff] %v261
        %309 = vst [vmem:[%s164 + $0x8] sm:$0xff] %v264
        %310 = vst [vmem:[%s164 + $0x10] sm:$0xff] %v267
        %311 = vst [vmem:[%s164 + $0x18] sm:$0xff] %v270
        %312 = vst [vmem:[%s164 + $0x20] sm:$0xff] %v273
        %313 = vst [vmem:[%s164 + $0x28] sm:$0xff] %v276
        %314 = vst [vmem:[%s164 + $0x30] sm:$0xff] %v279
        %315 = vst [vmem:[%s164 + $0x38] sm:$0xff] %v282
        %316 = vst [vmem:[%s164 + $0x40] sm:$0xff] %v285
        %317 = vst [vmem:[%s164 + $0x48] sm:$0xff] %v288
        %318 = vst [vmem:[%s164 + $0x50] sm:$0xff] %v291
        %319 = vst [vmem:[%s164 + $0x58] sm:$0xff] %v294
        %320 = vst [vmem:[%s164 + $0x60] sm:$0xff] %v297
        %321 = vst [vmem:[%s164 + $0x68] sm:$0xff] %v300
        %322 = vst [vmem:[%s164 + $0x70] sm:$0xff] %v303
        %323 = vst [vmem:[%s164 + $0x78] sm:$0xff] %v306
        %s324 = sand.u32 %s93, 1
        %s325 = scalar_lea.sflag [#allocation3], %s324
        %s326 = sand.u32 %s93, 1
        %s327 = smul.addr %s326, 128
        %s328 = scalar_lea.vmem [#allocation2], %s327
        // Predicated region
        $region33: #{tpu_custom_call.1} parent=31 // pred_check
          %p329 = pneg %p103
        $region34: #{tpu_custom_call.1} parent=31 // pred_check_branch
          %331 = sbr.rel (%p329) target = $region36
        $region35: #{tpu_custom_call.1} parent=31 // pred_region
          %s332 = smul.u32 16, %s17
          %334 = vsyncadd %s325, 0
          %s335 = smul.addr %s332, 8
          %s336 = scalar_lea.hbm %s3, %s335
          %s337 = sshll.u32 %s328, 4
          %s338 = int_to_ptr.vmem [resolvable:$true] %s337
          %s339 = sshll.u32 %s336, 4
          %s340 = int_to_ptr.hbm [resolvable:$true] %s339
          %345 = dma.vmem_to_hbm [thread:$0]  %s338, 2048, %s340, %s325, 128, 128, 8
        $region36: #{tpu_custom_call.1} parent=31 // pred_fallthru
          _
      $region32: #{tpu_custom_call.1} parent=5 // pred_fallthru
        _
      %p346 = scmp.le.s32.totalorder 2, %s12
      // Predicated region
      $region37: #{tpu_custom_call.1} parent=5 // pred_check
        %p347 = pneg %p346
      $region38: #{tpu_custom_call.1} parent=5 // pred_check_branch
        %349 = sbr.rel (%p347) target = $region40
      $region39: #{tpu_custom_call.1} parent=5 // pred_region
        %s350 = ssub.s32 %s12, 2
        // Predicated region
        $region41: #{tpu_custom_call.1} parent=39 // pred_check
          %p351 = pneg %p109
        $region42: #{tpu_custom_call.1} parent=39 // pred_check_branch
          %353 = sbr.rel (%p351) target = $region44
        $region43: #{tpu_custom_call.1} parent=39 // pred_region
          %s354 = sand.u32 %s94, 1
          %s355 = scalar_lea.sflag [#allocation3], %s354
          %s356 = sand.u32 %s94, 1
          %s357 = smul.addr %s356, 128
          %s358 = scalar_lea.vmem [#allocation2], %s357
          %360 = dma.done %s355, 2048
        $region44: #{tpu_custom_call.1} parent=39 // pred_fallthru
          _
      $region40: #{tpu_custom_call.1} parent=5 // pred_fallthru
        _
    $region6: #{tpu_custom_call.1} parent=1 // loop_footer
      %s16 = sadd.s32 1, %s12
    $region7: #{tpu_custom_call.1} parent=1 // loop_footer_branch
      %11 = sbr.rel target = $region3
    $region8: #{tpu_custom_call.1} parent=1 // loop_exit
      _
    %361 = vsyncpa [#allocation3], 1
    %s362 = scalar_lea.sflag [#allocation3], 1
    %363 = vsyncpa %s362, 1

</llo_original>
